<compile_context>
chip_gen: v5e
topology: v5e:2x2
jax: 0.10.0
libtpu: 0.0.40
codegen_flags: <defaults>
</compile_context>

<pallas_src>
import jax
import jax.numpy as jnp
from jax.experimental import pallas as pl
from jax.experimental.pallas import tpu as pltpu


def _round_up(v, m):
    return (v + m - 1) // m * m


def _mlinear_kernel(ts_ref, rows_ref, src_ref, x_ref, w_ref, b_ref, o_ref):
    # ts_ref/rows_ref/src_ref: SMEM (T,) int32 prefetch
    # x_ref: (tm, K) f32, w_ref: (1, K, tn) weight_dtype, b_ref: (1, 1, tn) f32,
    # o_ref: (tm, tn) f32
    t = pl.program_id(1)
    valid = rows_ref[t] > 0

    @pl.when(valid)
    def _():
        a = x_ref[...].astype(w_ref.dtype)                         # bf16 (or f32) operand
        y = jnp.dot(a, w_ref[0], preferred_element_type=jnp.float32)  # MXU, f32 acc
        y = y + b_ref[0]                                            # (1, tn) broadcast, f32
        y = jnp.maximum(y, 0.0)                                     # relu (drop=False path)
        o_ref[...] = y.astype(o_ref.dtype)

    @pl.when(jnp.logical_not(valid))
    def _():
        o_ref[...] = jnp.zeros_like(o_ref)                          # deterministic padding rows


def _choose_tn(K, Np, tm, wbytes, budget=12 * 1024 * 1024):
    """Largest tn (multiple of 128 dividing Np) whose double-buffered working set fits."""
    cands = [Np] + [c for c in (512, 256, 128) if c < Np and Np % c == 0]
    for tn in cands:
        work = 2 * (tm * K * 4 + K * tn * wbytes + tn * 4 + tm * tn * 4)
        if work <= budget:
            return tn
    return cands[-1]


def mlinear_forward(x, scene, W, b, *, weight_dtype=jnp.bfloat16, tm=None, tn=None):
    """Grouped per-scene linear: y = relu(x @ W[scene] + b[scene]).

    x: (B, inshape) f32, scene: (B,) int, W: (S, inshape, outshape), b: (S, outshape).
    Returns (y, scene) with y: (B, outshape), matching the PyTorch module.
    """
    B, K = x.shape
    S, Kw, N = W.shape
    assert Kw == K

    scene_in = scene
    scene = jnp.clip(scene.astype(jnp.int32), 0, S - 1)        # guard OOB scene indices

    Np = _round_up(N, 128)                                       # lane-dense output width
    wbytes = jnp.dtype(weight_dtype).itemsize
    if tm is None:
        tm = min(256, _round_up(B, 8))                           # row tile
    tm = max(8, _round_up(tm, 8))
    if tn is None:
        tn = _choose_tn(K, Np, tm, wbytes)
    assert tn % 128 == 0 and Np % tn == 0

    T = (B + tm - 1) // tm + S                                   # static bound on row tiles

    # ---- wrapper-side regrouping (plain JAX) --------------------------------
    # NOTE: for stacks of mLinear layers sharing one scene vector, this
    # sort/pack plan should be computed once and reused across layers.
    sort_idx = jnp.argsort(scene)                                # rows grouped by scene
    scene_sorted = scene[sort_idx]
    counts = jnp.bincount(scene, length=S).astype(jnp.int32)     # (S,)
    tiles_per_group = (counts + tm - 1) // tm                    # (S,)
    cum_tiles = jnp.cumsum(tiles_per_group).astype(jnp.int32)    # (S,)
    tile_start = jnp.concatenate([jnp.zeros((1,), jnp.int32), cum_tiles[:-1]])
    cum_counts = jnp.cumsum(counts).astype(jnp.int32)
    group_row0 = jnp.concatenate([jnp.zeros((1,), jnp.int32), cum_counts[:-1]])
    n_used = cum_tiles[-1]                                       # number of real row tiles

    # destination (packed, padded) row for each sorted row
    rank = jnp.arange(B, dtype=jnp.int32) - group_row0[scene_sorted]
    dest = tile_start[scene_sorted] * tm + rank                  # (B,)
    x_packed = jnp.zeros((T * tm, K), x.dtype).at[dest].set(x[sort_idx])

    # per-tile metadata (scalar prefetch). Unused trailing tiles are clamped to
    # the last real tile so their x / W / b block indices repeat -> DMA skipped.
    tile_ids = jnp.arange(T, dtype=jnp.int32)
    t_eff = jnp.minimum(tile_ids, jnp.maximum(n_used - 1, 0))
    tile_scene = jnp.sum(t_eff[:, None] >= cum_tiles[None, :], axis=1).astype(jnp.int32)
    tile_scene = jnp.minimum(tile_scene, S - 1)
    within = tile_ids - tile_start[tile_scene]
    tile_rows = jnp.clip(counts[tile_scene] - within * tm, 0, tm).astype(jnp.int32)
    tile_rows = jnp.where(tile_ids < n_used, tile_rows, 0)
    tile_src = t_eff                                             # x row-tile to fetch

    # zero-pad the output dim so tn is lane dense; weights in (b)f16 to halve HBM traffic
    Wp = jnp.pad(W, ((0, 0), (0, 0), (0, Np - N))).astype(weight_dtype)
    bp = jnp.pad(b, ((0, 0), (0, Np - N))).astype(jnp.float32).reshape(S, 1, Np)

    grid = (Np // tn, T)                                         # n OUTER, row-tile INNER

    grid_spec = pltpu.PrefetchScalarGridSpec(
        num_scalar_prefetch=3,
        grid=grid,
        in_specs=[
            pl.BlockSpec((tm, K), lambda n, t, ts, rows, src: (src[t], 0)),      # packed x rows
            pl.BlockSpec((1, K, tn), lambda n, t, ts, rows, src: (ts[t], 0, n)),  # W[scene of tile]
            pl.BlockSpec((1, 1, tn), lambda n, t, ts, rows, src: (ts[t], 0, n)),  # b[scene of tile]
        ],
        out_specs=pl.BlockSpec((tm, tn), lambda n, t, ts, rows, src: (t, n)),
    )

    out_packed = pl.pallas_call(
        _mlinear_kernel,
        out_shape=jax.ShapeDtypeStruct((T * tm, Np), x.dtype),
        grid_spec=grid_spec,
        compiler_params=pltpu.CompilerParams(
            # n parallel (megacore shards columns, keeps per-core W reuse),
            # t arbitrary (never interleave scenes within a core).
            dimension_semantics=("parallel", "arbitrary"),
            vmem_limit_bytes=32 * 1024 * 1024,
        ),
    )(tile_scene, tile_rows, tile_src, x_packed, Wp, bp)

    # un-permute / un-pad back to the original row order and width (fused gather+slice)
    pos = jnp.zeros((B,), jnp.int32).at[sort_idx].set(dest)      # packed row of original row i
    y = out_packed[pos, :N]
    return y, scene_in


def reference_forward(x, scene, W, b, weight_dtype=jnp.float32):
    s = jnp.clip(scene.astype(jnp.int32), 0, W.shape[0] - 1)
    w = W[s].astype(weight_dtype)                                # (B, inshape, outshape)
    xb = x.astype(weight_dtype)
    y = jnp.einsum("bk,bkn->bn", xb, w, preferred_element_type=jnp.float32)
    y = y + b[s]
    return jnp.maximum(y, 0.0), scene


if __name__ == "__main__":
    # Small shapes consistent with the module.
    batch, inshape, outshape, num_scenes = 16, 32, 48, 4

    key = jax.random.PRNGKey(0)
    kx, kw, kb, ks = jax.random.split(key, 4)

    # Module init is xavier_normal_ for W and zeros for b; use a non-zero b here
    # so the bias-add path is actually validated.
    xavier_std = (2.0 / (inshape + outshape)) ** 0.5
    W = jax.random.normal(kw, (num_scenes, inshape, outshape), dtype=jnp.float32) * xavier_std
    b = 0.1 * jax.random.normal(kb, (num_scenes, outshape), dtype=jnp.float32)

    x = jax.random.normal(kx, (batch, inshape), dtype=jnp.float32)
    scene = jax.random.randint(ks, (batch,), 0, num_scenes, dtype=jnp.int32)

    # 1) f32 weights: tight check vs f32 reference (random scenes).
    y, scene_out = mlinear_forward(x, scene, W, b, weight_dtype=jnp.float32)
    y = jax.block_until_ready(y)
    y_ref, _ = reference_forward(x, scene, W, b)
    assert y.shape == (batch, outshape)
    assert jnp.allclose(y, y_ref, atol=1e-5, rtol=1e-5), "mismatch vs reference (random scenes)"

    # 2) Skewed scene distribution (empty groups, uneven counts); small tm forces a
    #    scene to span multiple row tiles and exercises trailing unused-tile clamping.
    scene2 = jnp.array([0] * 10 + [3] * 6, dtype=jnp.int32)
    y2, _ = mlinear_forward(x, scene2, W, b, weight_dtype=jnp.float32, tm=8)
    jax.block_until_ready(y2)
    y2_ref, _ = reference_forward(x, scene2, W, b)
    assert jnp.allclose(y2, y2_ref, atol=1e-5, rtol=1e-5), "mismatch vs reference (skewed scenes)"

    # 3) Default bf16 weights (halved W HBM traffic): check vs bf16 reference.
    y3, _ = mlinear_forward(x, scene, W, b)
    jax.block_until_ready(y3)
    y3_ref, _ = reference_forward(x, scene, W, b, weight_dtype=jnp.bfloat16)
    assert jnp.allclose(y3, y3_ref, atol=1e-2, rtol=1e-2), "mismatch vs reference (bf16 weights)"

    # 4) Wider output with an explicit tn=128 to exercise the multi-column-tile
    #    (n outer, t inner) grid and W-block reuse across row tiles.
    outshape_big = 160
    kw2, kb2 = jax.random.split(kw)
    std2 = (2.0 / (inshape + outshape_big)) ** 0.5
    W2 = jax.random.normal(kw2, (num_scenes, inshape, outshape_big), dtype=jnp.float32) * std2
    b2 = 0.1 * jax.random.normal(kb2, (num_scenes, outshape_big), dtype=jnp.float32)
    y4, _ = mlinear_forward(x, scene2, W2, b2, weight_dtype=jnp.float32, tm=8, tn=128)
    jax.block_until_ready(y4)
    y4_ref, _ = reference_forward(x, scene2, W2, b2)
    assert y4.shape == (batch, outshape_big)
    assert jnp.allclose(y4, y4_ref, atol=1e-5, rtol=1e-5), "mismatch vs reference (multi-n grid)"

    print("KERNEL_OK")
</pallas_src>

<mosaic_0001>
module attributes {stable_mosaic.version = 11 : i64} {
  func.func @_mlinear_kernel(%arg0: i32, %arg1: i32, %arg2: memref<5xi32, #tpu.memory_space<smem>>, %arg3: memref<5xi32, #tpu.memory_space<smem>>, %arg4: memref<5xi32, #tpu.memory_space<smem>>, %arg5: memref<16x32xf32, #tpu.memory_space<vmem>>, %arg6: memref<1x32x128xf32, #tpu.memory_space<vmem>>, %arg7: memref<1x1x128xf32, #tpu.memory_space<vmem>>, %arg8: memref<16x128xf32, #tpu.memory_space<vmem>>) attributes {dimension_semantics = [#tpu.dimension_semantics<parallel>, #tpu.dimension_semantics<arbitrary>], iteration_bounds = array<i64: 1, 5>, scalar_prefetch = 3 : i64, scratch_operands = 0 : i64, tpu.core_type = #tpu.core_type<tc>, window_params = [{transform_indices = @transform_0, window_bounds = array<i64: 16, 32>}, {transform_indices = @transform_1, window_bounds = array<i64: 1, 32, 128>}, {transform_indices = @transform_2, window_bounds = array<i64: 1, 1, 128>}, {transform_indices = @transform_3, window_bounds = array<i64: 16, 128>}]} {
    %0 = arith.index_cast %arg1 : i32 to index
    %1 = memref.load %arg3[%0] : memref<5xi32, #tpu.memory_space<smem>>
    %c0_i32 = arith.constant 0 : i32
    %2 = arith.cmpi sgt, %1, %c0_i32 : i32
    %3 = arith.extui %2 : i1 to i32
    %c0_i32_0 = arith.constant 0 : i32
    %4 = arith.cmpi ne, %3, %c0_i32_0 : i32
    scf.if %4 {
      %c0 = arith.constant 0 : index
      %c0_2 = arith.constant 0 : index
      %8 = vector.load %arg5[%c0, %c0_2] : memref<16x32xf32, #tpu.memory_space<vmem>>, vector<16x32xf32>
      %c0_3 = arith.constant 0 : index
      %c0_4 = arith.constant 0 : index
      %c0_5 = arith.constant 0 : index
      %9 = vector.load %arg6[%c0_3, %c0_4, %c0_5] : memref<1x32x128xf32, #tpu.memory_space<vmem>>, vector<1x32x128xf32>
      %10 = vector.shape_cast %9 : vector<1x32x128xf32> to vector<32x128xf32>
      %cst = arith.constant dense<0.000000e+00> : vector<16x128xf32>
      %11 = tpu.matmul %8, %10, %cst {dimension_numbers = #tpu.dot_dimension_numbers<[1], [0], [0], [1], [0, 0, 1, 1], [], []>} : vector<16x32xf32>, vector<32x128xf32>, vector<16x128xf32> -> vector<16x128xf32>
      %c0_6 = arith.constant 0 : index
      %c0_7 = arith.constant 0 : index
      %c0_8 = arith.constant 0 : index
      %12 = vector.load %arg7[%c0_6, %c0_7, %c0_8] : memref<1x1x128xf32, #tpu.memory_space<vmem>>, vector<1x1x128xf32>
      %13 = vector.shape_cast %12 : vector<1x1x128xf32> to vector<1x128xf32>
      %14 = vector.broadcast %13 : vector<1x128xf32> to vector<16x128xf32>
      %15 = arith.addf %11, %14 : vector<16x128xf32>
      %cst_9 = arith.constant 0.000000e+00 : f32
      %16 = vector.broadcast %cst_9 : f32 to vector<16x128xf32>
      %17 = arith.maximumf %15, %16 : vector<16x128xf32>
      %c0_10 = arith.constant 0 : index
      %c0_11 = arith.constant 0 : index
      %18 = vector.load %arg8[%c0_10, %c0_11] : memref<16x128xf32, #tpu.memory_space<vmem>>, vector<16x128xf32>
      tpu.vector_store %arg8[%c0_10, %c0_11], %17 {strides = array<i32>} : memref<16x128xf32, #tpu.memory_space<vmem>>, vector<16x128xf32>,
    } else {
    }
    %true = arith.constant true
    %5 = arith.xori %2, %true : i1
    %6 = arith.extui %5 : i1 to i32
    %c0_i32_1 = arith.constant 0 : i32
    %7 = arith.cmpi ne, %6, %c0_i32_1 : i32
    scf.if %7 {
      %cst = arith.constant 0.000000e+00 : f32
      %8 = vector.broadcast %cst : f32 to vector<16x128xf32>
      %c0 = arith.constant 0 : index
      %c0_2 = arith.constant 0 : index
      %9 = vector.load %arg8[%c0, %c0_2] : memref<16x128xf32, #tpu.memory_space<vmem>>, vector<16x128xf32>
      tpu.vector_store %arg8[%c0, %c0_2], %8 {strides = array<i32>} : memref<16x128xf32, #tpu.memory_space<vmem>>, vector<16x128xf32>,
    } else {
    }
    return
  }
  func.func @transform_0(%arg0: i32, %arg1: i32, %arg2: memref<5xi32, #tpu.memory_space<smem>>, %arg3: memref<5xi32, #tpu.memory_space<smem>>, %arg4: memref<5xi32, #tpu.memory_space<smem>>) -> (i32, i32) {
    %0 = arith.index_cast %arg1 : i32 to index
    %1 = memref.load %arg4[%0] : memref<5xi32, #tpu.memory_space<smem>>
    %c0_i32 = arith.constant 0 : i32
    %c0_i32_0 = arith.constant 0 : i32
    return %1, %c0_i32 : i32, i32
  }
  func.func @transform_1(%arg0: i32, %arg1: i32, %arg2: memref<5xi32, #tpu.memory_space<smem>>, %arg3: memref<5xi32, #tpu.memory_space<smem>>, %arg4: memref<5xi32, #tpu.memory_space<smem>>) -> (i32, i32, i32) {
    %0 = arith.index_cast %arg1 : i32 to index
    %1 = memref.load %arg2[%0] : memref<5xi32, #tpu.memory_space<smem>>
    %c0_i32 = arith.constant 0 : i32
    %c0_i32_0 = arith.constant 0 : i32
    return %1, %c0_i32, %arg0 : i32, i32, i32
  }
  func.func @transform_2(%arg0: i32, %arg1: i32, %arg2: memref<5xi32, #tpu.memory_space<smem>>, %arg3: memref<5xi32, #tpu.memory_space<smem>>, %arg4: memref<5xi32, #tpu.memory_space<smem>>) -> (i32, i32, i32) {
    %0 = arith.index_cast %arg1 : i32 to index
    %1 = memref.load %arg2[%0] : memref<5xi32, #tpu.memory_space<smem>>
    %c0_i32 = arith.constant 0 : i32
    %c0_i32_0 = arith.constant 0 : i32
    return %1, %c0_i32, %arg0 : i32, i32, i32
  }
  func.func @transform_3(%arg0: i32, %arg1: i32, %arg2: memref<5xi32, #tpu.memory_space<smem>>, %arg3: memref<5xi32, #tpu.memory_space<smem>>, %arg4: memref<5xi32, #tpu.memory_space<smem>>) -> (i32, i32) {
    %c0_i32 = arith.constant 0 : i32
    return %arg1, %arg0 : i32, i32
  }
}

</mosaic_0001>

<llo_original>
// kernel: tpu_custom_call.1
$region0: #{tpu_custom_call.1}
  #allocation0 [shape = 'u32[]', space=smem, size = 0x4, offset = 0x4, fixed_abs, tag = 'smem constant byte address 0x4 - core index']
  #allocation1 [shape = 'u32[72,128]{1,0:T(1,128)}', space=vmem, size = 0x9000, scoped, tag = 'internal scratch']
  #allocation2 [shape = 's32[1]{0}', space=sflag, size = 0x4, scoped, tag = 'scoped memory for tpu_custom_call.1']
  #allocation3 [shape = 'u8[512]{0}', space=smem, size = 0x200, scoped, tag = 'prefetched SMEM operand 0']
  #allocation4 [shape = 'u8[512]{0}', space=smem, size = 0x200, scoped, tag = 'prefetched SMEM operand 1']
  #allocation5 [shape = 'u8[512]{0}', space=smem, size = 0x200, scoped, tag = 'prefetched SMEM operand 2']
  %s0 = inlined_call_operand.vmem [shape: s32[5], index: 0, kind: input, shape index: {}]
  %s1 = inlined_call_operand.vmem [shape: s32[5], index: 1, kind: input, shape index: {}]
  %s2 = inlined_call_operand.vmem [shape: s32[5], index: 2, kind: input, shape index: {}]
  %s3 = inlined_call_operand.vmem [shape: f32[80,32], index: 3, kind: input, shape index: {}]
  %s4 = inlined_call_operand.hbm [shape: f32[4,32,128], index: 4, kind: input, shape index: {}]
  %s5 = inlined_call_operand.vmem [shape: f32[4,1,128], index: 5, kind: input, shape index: {}]
  %s6 = inlined_call_operand.hbm [shape: f32[80,128], index: 6, kind: output, shape index: {}]
  %s7 = sld [smem:[#allocation0]]
  $region57: #{tpu_custom_call.1} parent=0
    _
  %s9 = ssub.s32 1, %s7
  %s10 = scalar_select 0, %s9, %s7
  %s12 = sshll.u32 %s0, 4
  %s13 = int_to_ptr.vmem [resolvable:$true] %s12
  %15 = dma.vmem_to_smem %s13, 16, [#allocation3], [#allocation2]
  %s17 = sshll.u32 %s1, 4
  %s18 = int_to_ptr.vmem [resolvable:$true] %s17
  %20 = dma.vmem_to_smem %s18, 16, [#allocation4], [#allocation2]
  %s22 = sshll.u32 %s2, 4
  %s23 = int_to_ptr.vmem [resolvable:$true] %s22
  %25 = dma.vmem_to_smem %s23, 16, [#allocation5], [#allocation2]
  %27 = dma.done [#allocation2], 48
  %28 = sfence
  $region1: #{tpu_custom_call.1} parent=0
    #allocation6 [shape = 'u8[32768]{0}', space=vmem, size = 0x8000, scoped, tag = 'input window, operand 4']
    #allocation7 [shape = 's32[2]{0}', space=sflag, size = 0x8, scoped, tag = 'scoped memory for tpu_custom_call.1']
    #allocation8 [shape = 's32[2]{0}', space=sflag, size = 0x8, scoped, tag = 'scoped memory for tpu_custom_call.1']
    #allocation9 [shape = 'u8[16384]{0}', space=vmem, size = 0x4000, scoped, tag = 'output window, operand 0']
    %29 = vsyncpa [#allocation7], 0
    %s30 = scalar_lea.sflag [#allocation7], 1
    %31 = vsyncpa %s30, 0
    %32 = vsyncpa [#allocation8], 0
    %s33 = scalar_lea.sflag [#allocation8], 1
    %34 = vsyncpa %s33, 0
    loop: start=0, step=1, limit=7
    $region2: #{tpu_custom_call.1} parent=1 // loop_pre_header
      _
    $region3: #{tpu_custom_call.1} parent=1 // loop_header
      %s36 = sphi 0, %s40
      %p37 = scmp.ge.s32.totalorder %s36, 7
      %s43 = sphi 0, %s55
      %s44 = sphi 0, %s51
      %s45 = sphi 0, %s43
      %s46 = sphi 0, %s44
      %s47 = sphi 0, %s45
      %s48 = sphi 0, %s46
      %s60 = sphi 0, %s62
      %s63 = sphi 0, %s60
      %s64 = sphi 0, %s63
      %s80 = sphi 0, %s64
      %s90 = sphi 0, %s92
      %s93 = sphi 0, %s90
      %s94 = sphi 0, %s93
      %s110 = sphi 0, %s94
      %s120 = sphi 0, %s122
      %s123 = sphi 0, %s120
      %s124 = sphi 0, %s123
      %s140 = sphi 0, %s124
      %s148 = sphi 0, %s150
      %s151 = sphi 0, %s148
      %s152 = sphi 0, %s151
      %s168 = sphi 0, %s152
    $region4: #{tpu_custom_call.1} parent=1 // loop_header_branch
      %39 = sbr.rel (%p37) target = $region8
    $region5: #{tpu_custom_call.1} parent=1 // loop_body
      %s41 = ssub.s32 %s36, 1
      %s42 = ssub.s32 %s36, 2
      %s49 = sadd.s32 1, %s44
      %p50 = scmp.ge.s32.totalorder %s49, 5
      %s51 = scalar_select %p50, 0, %s49
      %s52 = sadd.s32 1, %s43
      %s53 = scalar_select %p50, %s52, %s43
      %p54 = scmp.ge.s32.totalorder %s53, 1
      %s55 = scalar_select %p54, 0, %s53
      %s56 = sld [smem:[#allocation5 + %s44]]
      %s57 = sld [smem:[#allocation5 + %s51]]
      %s58 = ssub.s32 %s56, %s57
      %p59 = scmp.eq.s32.totalorder %s58, 0
      %s61 = sadd.s32 %s60, 1
      %s62 = scalar_select %p59, %s60, %s61
      %p65 = pneg %p59
      %p66 = scmp.eq.s32.totalorder %s36, 4
      %p67 = por %p65, %p66
      %p68 = scmp.ne.s32.totalorder %s60, %s63
      %p69 = scmp.eq.s32.totalorder %s36, 0
      %p70 = por %p68, %p69
      %p71 = scmp.ne.s32.totalorder %s60, %s63
      %p72 = scmp.eq.s32.totalorder %s41, 4
      %p73 = por %p71, %p72
      %p74 = scmp.ne.s32.totalorder %s63, %s64
      %p75 = scmp.eq.s32.totalorder %s41, 0
      %p76 = por %p74, %p75
      %p77 = scmp.ne.s32.totalorder %s63, %s64
      %p78 = scmp.eq.s32.totalorder %s42, 4
      %p79 = por %p77, %p78
      %p81 = scmp.ne.s32.totalorder %s64, %s80
      %p82 = scmp.eq.s32.totalorder %s42, 0
      %p83 = por %p81, %p82
      %s84 = sld [smem:[#allocation3 + %s44]]
      %s85 = sld [smem:[#allocation3 + %s51]]
      %s86 = ssub.s32 %s84, %s85
      %s87 = ssub.s32 %s43, %s55
      %s88 = sor.u32 %s86, %s87
      %p89 = scmp.eq.s32.totalorder %s88, 0
      %s91 = sadd.s32 %s90, 1
      %s92 = scalar_select %p89, %s90, %s91
      %p95 = pneg %p89
      %p96 = scmp.eq.s32.totalorder %s36, 4
      %p97 = por %p95, %p96
      %p98 = scmp.ne.s32.totalorder %s90, %s93
      %p99 = scmp.eq.s32.totalorder %s36, 0
      %p100 = por %p98, %p99
      %p101 = scmp.ne.s32.totalorder %s90, %s93
      %p102 = scmp.eq.s32.totalorder %s41, 4
      %p103 = por %p101, %p102
      %p104 = scmp.ne.s32.totalorder %s93, %s94
      %p105 = scmp.eq.s32.totalorder %s41, 0
      %p106 = por %p104, %p105
      %p107 = scmp.ne.s32.totalorder %s93, %s94
      %p108 = scmp.eq.s32.totalorder %s42, 4
      %p109 = por %p107, %p108
      %p111 = scmp.ne.s32.totalorder %s94, %s110
      %p112 = scmp.eq.s32.totalorder %s42, 0
      %p113 = por %p111, %p112
      %s114 = sld [smem:[#allocation3 + %s44]]
      %s115 = sld [smem:[#allocation3 + %s51]]
      %s116 = ssub.s32 %s114, %s115
      %s117 = ssub.s32 %s43, %s55
      %s118 = sor.u32 %s116, %s117
      %p119 = scmp.eq.s32.totalorder %s118, 0
      %s121 = sadd.s32 %s120, 1
      %s122 = scalar_select %p119, %s120, %s121
      %p125 = pneg %p119
      %p126 = scmp.eq.s32.totalorder %s36, 4
      %p127 = por %p125, %p126
      %p128 = scmp.ne.s32.totalorder %s120, %s123
      %p129 = scmp.eq.s32.totalorder %s36, 0
      %p130 = por %p128, %p129
      %p131 = scmp.ne.s32.totalorder %s120, %s123
      %p132 = scmp.eq.s32.totalorder %s41, 4
      %p133 = por %p131, %p132
      %p134 = scmp.ne.s32.totalorder %s123, %s124
      %p135 = scmp.eq.s32.totalorder %s41, 0
      %p136 = por %p134, %p135
      %p137 = scmp.ne.s32.totalorder %s123, %s124
      %p138 = scmp.eq.s32.totalorder %s42, 4
      %p139 = por %p137, %p138
      %p141 = scmp.ne.s32.totalorder %s124, %s140
      %p142 = scmp.eq.s32.totalorder %s42, 0
      %p143 = por %p141, %p142
      %s144 = ssub.s32 %s44, %s51
      %s145 = ssub.s32 %s43, %s55
      %s146 = sor.u32 %s144, %s145
      %p147 = scmp.eq.s32.totalorder %s146, 0
      %s149 = sadd.s32 %s148, 1
      %s150 = scalar_select %p147, %s148, %s149
      %p153 = pneg %p147
      %p154 = scmp.eq.s32.totalorder %s36, 4
      %p155 = por %p153, %p154
      %p156 = scmp.ne.s32.totalorder %s148, %s151
      %p157 = scmp.eq.s32.totalorder %s36, 0
      %p158 = por %p156, %p157
      %p159 = scmp.ne.s32.totalorder %s148, %s151
      %p160 = scmp.eq.s32.totalorder %s41, 4
      %p161 = por %p159, %p160
      %p162 = scmp.ne.s32.totalorder %s151, %s152
      %p163 = scmp.eq.s32.totalorder %s41, 0
      %p164 = por %p162, %p163
      %p165 = scmp.ne.s32.totalorder %s151, %s152
      %p166 = scmp.eq.s32.totalorder %s42, 4
      %p167 = por %p165, %p166
      %p169 = scmp.ne.s32.totalorder %s152, %s168
      %p170 = scmp.eq.s32.totalorder %s42, 0
      %p171 = por %p169, %p170
      %p172 = scmp.le.s32.totalorder 1, %s36
      %p173 = scmp.lt.s32.totalorder %s36, 6
      %p174 = pnand %p172, %p173
      %p175 = pneg %p174
      // Predicated region
      $region9: #{tpu_custom_call.1} parent=5 // pred_check
        _
      $region10: #{tpu_custom_call.1} parent=5 // pred_check_branch
        %177 = sbr.rel (%p174) target = $region12
      $region11: #{tpu_custom_call.1} parent=5 // pred_region
        %s178 = ssub.s32 %s36, 1
      $region12: #{tpu_custom_call.1} parent=5 // pred_fallthru
        _
      %p179 = scmp.lt.s32.totalorder %s36, 5
      // Predicated region
      $region13: #{tpu_custom_call.1} parent=5 // pred_check
        %p180 = pneg %p179
      $region14: #{tpu_custom_call.1} parent=5 // pred_check_branch
        %182 = sbr.rel (%p180) target = $region16
      $region15: #{tpu_custom_call.1} parent=5 // pred_region
        // Predicated region
        $region17: #{tpu_custom_call.1} parent=15 // pred_check
          %p183 = pneg %p70
        $region18: #{tpu_custom_call.1} parent=15 // pred_check_branch
          %185 = sbr.rel (%p183) target = $region20
        $region19: #{tpu_custom_call.1} parent=15 // pred_region
          %s186 = sld [smem:[#allocation5 + %s44]]
          %s187 = smul.u32 2, %s186
          %p188 = scmp.lt.s32.totalorder %s187, 9
          %s189 = scalar_select %p188, %s187, 9
          %s190 = smul.addr %s189, 8
          %s191 = scalar_lea.vmem %s3, %s190
          %s192 = sld [smem:[#allocation5 + %s44]]
          %s193 = smul.u32 2, %s192
        $region20: #{tpu_custom_call.1} parent=15 // pred_fallthru
          _
        // Predicated region
        $region21: #{tpu_custom_call.1} parent=15 // pred_check
          %p194 = pneg %p100
        $region22: #{tpu_custom_call.1} parent=15 // pred_check_branch
          %196 = sbr.rel (%p194) target = $region24
        $region23: #{tpu_custom_call.1} parent=15 // pred_region
          %s197 = sand.u32 %s90, 1
          %s198 = scalar_lea.sflag [#allocation7], %s197
          %s199 = sand.u32 %s90, 1
          %s200 = smul.addr %s199, 32
          %s201 = scalar_lea.vmem [#allocation6], %s200
          %s202 = sld [smem:[#allocation3 + %s44]]
          %204 = vsyncadd %s198, 0
          %s205 = smul.addr %s202, 4
          %s206 = sadd.s32 %s43, %s205
          %s207 = smul.addr %s206, 8
          %s208 = scalar_lea.hbm %s4, %s207
          %s209 = sshll.u32 %s208, 4
          %s210 = int_to_ptr.hbm [resolvable:$true] %s209
          %s211 = sshll.u32 %s201, 4
          %s212 = int_to_ptr.vmem [resolvable:$true] %s211
          %217 = dma.hbm_to_vmem [thread:$0]  %s210, 512, %s212, %s198, 128, 128, 8
        $region24: #{tpu_custom_call.1} parent=15 // pred_fallthru
          _
        // Predicated region
        $region25: #{tpu_custom_call.1} parent=15 // pred_check
          %p218 = pneg %p130
        $region26: #{tpu_custom_call.1} parent=15 // pred_check_branch
          %220 = sbr.rel (%p218) target = $region28
        $region27: #{tpu_custom_call.1} parent=15 // pred_region
          %s221 = sld [smem:[#allocation3 + %s44]]
          %p222 = scmp.lt.s32.totalorder %s221, 3
          %s223 = scalar_select %p222, %s221, 3
          %p224 = scmp.lt.s32.totalorder %s43, 0
          %s225 = scalar_select %p224, %s43, 0
          %s226 = sadd.s32 %s225, %s223
          %s227 = scalar_lea.vmem %s5, %s226
          %s228 = sld [smem:[#allocation3 + %s44]]
        $region28: #{tpu_custom_call.1} parent=15 // pred_fallthru
          _
      $region16: #{tpu_custom_call.1} parent=5 // pred_fallthru
        _
      %p229 = scmp.le.s32.totalorder 1, %s36
      %p230 = scmp.lt.s32.totalorder %s36, 6
      %p231 = pnand %p229, %p230
      %p232 = pneg %p231
      // Predicated region
      $region29: #{tpu_custom_call.1} parent=5 // pred_check
        _
      $region30: #{tpu_custom_call.1} parent=5 // pred_check_branch
        %234 = sbr.rel (%p231) target = $region32
      $region31: #{tpu_custom_call.1} parent=5 // pred_region
        %s235 = ssub.s32 %s36, 1
        %s236 = sand.u32 %s93, 1
        %s237 = scalar_lea.sflag [#allocation7], %s236
        %s238 = sand.u32 %s93, 1
        %s239 = smul.addr %s238, 32
        %s240 = scalar_lea.vmem [#allocation6], %s239
        // Predicated region
        $region33: #{tpu_custom_call.1} parent=31 // pred_check
          %p241 = pneg %p106
        $region34: #{tpu_custom_call.1} parent=31 // pred_check_branch
          %243 = sbr.rel (%p241) target = $region36
        $region35: #{tpu_custom_call.1} parent=31 // pred_region
          %245 = dma.done %s237, 512
        $region36: #{tpu_custom_call.1} parent=31 // pred_fallthru
          _
        %s246 = sld [smem:[#allocation5 + %s46]]
        %s247 = smul.u32 2, %s246
        %p248 = scmp.lt.s32.totalorder %s247, 9
        %s249 = scalar_select %p248, %s247, 9
        %s250 = smul.addr %s249, 8
        %s251 = scalar_lea.vmem %s3, %s250
        %p252 = pneg %p76
        %p253 = pneg %p73
        %s254 = sand.u32 %s93, 1
        %s255 = scalar_lea.sflag [#allocation7], %s254
        %s256 = sand.u32 %s93, 1
        %s257 = smul.addr %s256, 32
        %s258 = scalar_lea.vmem [#allocation6], %s257
        %p259 = pneg %p106
        %p260 = pneg %p103
        %s261 = sld [smem:[#allocation3 + %s46]]
        %p262 = scmp.lt.s32.totalorder %s261, 3
        %s263 = scalar_select %p262, %s261, 3
        %p264 = scmp.lt.s32.totalorder %s45, 0
        %s265 = scalar_select %p264, %s45, 0
        %s266 = sadd.s32 %s265, %s263
        %s267 = scalar_lea.vmem %s5, %s266
        %p268 = pneg %p136
        %p269 = pneg %p133
        %p270 = pneg %p164
        %p271 = pneg %p161
        %s272 = sand.u32 %s151, 1
        %s273 = scalar_lea.sflag [#allocation8], %s272
        %s274 = sand.u32 %s151, 1
        %s275 = smul.addr %s274, 16
        %s276 = scalar_lea.vmem [#allocation9], %s275
        %s277 = sld [smem:[#allocation5 + %s46]]
        %s278 = smul.u32 2, %s277
        %p279 = scmp.lt.s32.totalorder %s278, 9
        %s280 = scalar_select %p279, %s278, 9
        %s281 = smul.addr %s280, 8
        %s282 = scalar_lea.vmem %s3, %s281
        %s283 = sld [smem:[#allocation5 + %s46]]
        %s284 = smul.u32 2, %s283
        %s285 = sld [smem:[#allocation3 + %s46]]
        %s286 = sld [smem:[#allocation3 + %s46]]
        %p287 = scmp.lt.s32.totalorder %s286, 3
        %s288 = scalar_select %p287, %s286, 3
        %p289 = scmp.lt.s32.totalorder %s45, 0
        %s290 = scalar_select %p289, %s45, 0
        %s291 = sadd.s32 %s290, %s288
        %s292 = scalar_lea.vmem %s5, %s291
        %s293 = sld [smem:[#allocation3 + %s46]]
        %s294 = smul.u32 2, %s46
        %s295 = sld [smem:[#allocation4 + %s46]]
        %p296 = scmp.gt.s32.totalorder %s295, 0
        // Predicated region
        $region37: #{tpu_custom_call.1} parent=31 // pred_check
          %p297 = pneg %p296
        $region38: #{tpu_custom_call.1} parent=31 // pred_check_branch
          %299 = sbr.rel (%p297) target = $region40
        $region39: #{tpu_custom_call.1} parent=31 // pred_region
          %v300 = vld [vmem:[%s282] sm:$0xff]
          %v301 = vld [vmem:[%s282 + $0x8] sm:$0xff]
          %v302 = vld [vmem:[%s240] sm:$0xff]
          %v303 = vld [vmem:[%s240 + $0x8] sm:$0xff]
          %v304 = vld [vmem:[%s240 + $0x10] sm:$0xff]
          %v305 = vld [vmem:[%s240 + $0x18] sm:$0xff]
          %v306 = vld [vmem:[%s292] sm:$0x1]
          %v308 = vperm.slane %v306, 0
          %vm310 = vcmask 261120
          %v312 = vsel %vm310, %v300, 0
          %v315 = vsel %vm310, %v301, 0
          %317 = vmatpush.msra.mxu0 0.0
          %318 = vmatpush.msra.mxu0 0.0
          %319 = vmatpush.msra.mxu0 0.0
          %320 = vmatpush.msra.mxu0 0.0
          %321 = vmatpush.msra.mxu0 0.0
          %322 = vmatpush.msra.mxu0 0.0
          %323 = vmatpush.msra.mxu0 0.0
          %324 = vmatpush.msra.mxu0 0.0
          %325 = vmatpush.msra.mxu0 0.0
          %326 = vmatpush.msra.mxu0 0.0
          %327 = vmatpush.msra.mxu0 0.0
          %328 = vmatpush.msra.mxu0 0.0
          %329 = vmatpush.msra.mxu0 %v305
          %330 = vmatpush.msra.mxu0 %v304
          %331 = vmatpush.msra.mxu0 %v303
          %332 = vmatpush.msra.mxu0 %v302
          %333 = vmatmul.f32.gmra.mxu0 %v312
          %v334 = vpop.f32.mrf.mxu0
          %v335 = vadd.f32 %v308, %v334
          %336 = vmatmul.f32.gmra.mxu0 %v315
          %v337 = vpop.f32.mrf.mxu0
          %v338 = vadd.f32 %v308, %v337
          %339 = vdwg.mxu0
          %v340 = vmax.f32 %v335, 0.0
          %v341 = vmax.f32 %v338, 0.0
          %342 = vst [vmem:[%s276] sm:$0xff] %v340
          %343 = vst [vmem:[%s276 + $0x8] sm:$0xff] %v341
        $region40: #{tpu_custom_call.1} parent=31 // pred_fallthru
          _
        %p344 = scmp.le.s32.totalorder %s295, 0
        // Predicated region
        $region41: #{tpu_custom_call.1} parent=31 // pred_check
          %p345 = pneg %p344
        $region42: #{tpu_custom_call.1} parent=31 // pred_check_branch
          %347 = sbr.rel (%p345) target = $region44
        $region43: #{tpu_custom_call.1} parent=31 // pred_region
          %348 = vst [vmem:[%s276] sm:$0xff] 0.0
          %349 = vst [vmem:[%s276 + $0x8] sm:$0xff] 0.0
        $region44: #{tpu_custom_call.1} parent=31 // pred_fallthru
          _
        %s350 = sand.u32 %s151, 1
        %s351 = scalar_lea.sflag [#allocation8], %s350
        %s352 = sand.u32 %s151, 1
        %s353 = smul.addr %s352, 16
        %s354 = scalar_lea.vmem [#allocation9], %s353
        // Predicated region
        $region45: #{tpu_custom_call.1} parent=31 // pred_check
          %p355 = pneg %p161
        $region46: #{tpu_custom_call.1} parent=31 // pred_check_branch
          %357 = sbr.rel (%p355) target = $region48
        $region47: #{tpu_custom_call.1} parent=31 // pred_region
          %s358 = smul.u32 2, %s46
          %360 = vsyncadd %s351, 0
          %s361 = sadd.s32 %s45, %s358
          %s362 = smul.addr %s361, 8
          %s363 = scalar_lea.hbm %s6, %s362
          %s364 = sshll.u32 %s354, 4
          %s365 = int_to_ptr.vmem [resolvable:$true] %s364
          %s366 = sshll.u32 %s363, 4
          %s367 = int_to_ptr.hbm [resolvable:$true] %s366
          %372 = dma.vmem_to_hbm [thread:$0]  %s365, 256, %s367, %s351, 128, 128, 8
        $region48: #{tpu_custom_call.1} parent=31 // pred_fallthru
          _
      $region32: #{tpu_custom_call.1} parent=5 // pred_fallthru
        _
      %p373 = scmp.le.s32.totalorder 2, %s36
      // Predicated region
      $region49: #{tpu_custom_call.1} parent=5 // pred_check
        %p374 = pneg %p373
      $region50: #{tpu_custom_call.1} parent=5 // pred_check_branch
        %376 = sbr.rel (%p374) target = $region52
      $region51: #{tpu_custom_call.1} parent=5 // pred_region
        %s377 = ssub.s32 %s36, 2
        // Predicated region
        $region53: #{tpu_custom_call.1} parent=51 // pred_check
          %p378 = pneg %p167
        $region54: #{tpu_custom_call.1} parent=51 // pred_check_branch
          %380 = sbr.rel (%p378) target = $region56
        $region55: #{tpu_custom_call.1} parent=51 // pred_region
          %s381 = sand.u32 %s152, 1
          %s382 = scalar_lea.sflag [#allocation8], %s381
          %s383 = sand.u32 %s152, 1
          %s384 = smul.addr %s383, 16
          %s385 = scalar_lea.vmem [#allocation9], %s384
          %387 = dma.done %s382, 256
        $region56: #{tpu_custom_call.1} parent=51 // pred_fallthru
          _
      $region52: #{tpu_custom_call.1} parent=5 // pred_fallthru
        _
    $region6: #{tpu_custom_call.1} parent=1 // loop_footer
      %s40 = sadd.s32 1, %s36
    $region7: #{tpu_custom_call.1} parent=1 // loop_footer_branch
      %35 = sbr.rel target = $region3
    $region8: #{tpu_custom_call.1} parent=1 // loop_exit
      _
    %388 = vsyncpa [#allocation7], 1
    %s389 = scalar_lea.sflag [#allocation7], 1
    %390 = vsyncpa %s389, 1
    %391 = vsyncpa [#allocation8], 1
    %s392 = scalar_lea.sflag [#allocation8], 1
    %393 = vsyncpa %s392, 1

</llo_original>
